<compile_context>
chip_gen: v5e
topology: v5e:2x2
jax: 0.10.0
libtpu: 0.0.40
codegen_flags: <defaults>
</compile_context>

<pallas_src>
import functools

import jax
import jax.numpy as jnp
from jax.experimental import pallas as pl
from jax.experimental.pallas import tpu as pltpu


def _round_up(x, m):
    return (x + m - 1) // m * m


def _disc_kernel(x_ref, mask_ref, w1_ref, b1_ref, w2r_ref, b2_ref, o_ref, *,
                 matmul_dtype):
    # ---- Linear 1: (TB, F) @ (F, 128), f32 accumulation on the MXU ----------
    h = jnp.dot(
        x_ref[...].astype(matmul_dtype),
        w1_ref[...].astype(matmul_dtype),
        preferred_element_type=jnp.float32,
    )
    h = h + b1_ref[...]                              # (TB,128) + (1,128)

    # ---- LeakyReLU (default negative_slope = 0.01) --------------------------
    h = jnp.where(h >= 0.0, h, 0.01 * h)

    # ---- Dropout: mask is pre-scaled {0, 1/(1-p)} -> single VPU multiply -----
    h = h * mask_ref[...]

    # ---- Linear 2: (TB,128) @ (128,1) as VPU mul + cross-lane (XLU) reduce ---
    logits = jnp.sum(h * w2r_ref[...], axis=-1, keepdims=True) + b2_ref[0]

    # ---- Sigmoid (exp rides the EUP slot) ------------------------------------
    o_ref[...] = (1.0 / (1.0 + jnp.exp(-logits))).astype(o_ref.dtype)


def _pick_batch_tile(B, F, H, block_b, budget_bytes=40 << 20):
    """Biggest batch tile (multiple of 8, <= block_b) whose footprint fits."""
    def footprint(t):
        # 2x double-buffered img/mask/out tiles + resident w1/b1/w2 (all f32)
        return 2 * t * F * 4 + 2 * t * H * 4 + 2 * t * 4 + F * H * 4 + 2 * H * 4

    tb = min(block_b, _round_up(B, 8))
    while tb > 8 and footprint(tb) > budget_bytes:
        tb = max(8, tb // 2)
    return tb, footprint(tb)


def discriminator_forward(img, w1, b1, w2, b2, *, drop_prob, key=None,
                          training=True, block_b=256,
                          matmul_dtype=jnp.bfloat16):
    """img: (B, H*W) f32 -> (B, 1) f32 in [0, 1]."""
    B, F = img.shape
    H = w1.shape[1]  # 128

    # Dropout keep-mask (inverted-dropout scaling), generated outside the kernel
    # because the in-kernel TPU PRNG primitives have no interpret-mode lowering.
    if training and float(drop_prob) > 0.0:
        if key is None:
            key = jax.random.PRNGKey(0)
        keep = jax.random.bernoulli(key, 1.0 - float(drop_prob), (B, H))
        mask = keep.astype(jnp.float32) * (1.0 / (1.0 - float(drop_prob)))
    else:
        mask = jnp.ones((B, H), jnp.float32)

    # Batch tiling: pad B so every block is full (simplest correct boundary).
    tb, fp_bytes = _pick_batch_tile(B, F, H, block_b)
    bp = _round_up(B, tb)
    if bp != B:
        img = jnp.pad(img, ((0, bp - B), (0, 0)))
        mask = jnp.pad(mask, ((0, bp - B), (0, 0)))
    grid = (bp // tb,)

    w2_row = w2.reshape(1, H)    # (128,1) -> (1,128) row for the VPU reduce
    b2_s = b2.reshape(1)         # scalar, lives in SMEM

    vmem_limit = int(min(max(fp_bytes + (2 << 20), 16 << 20), 48 << 20))

    kernel = functools.partial(_disc_kernel, matmul_dtype=matmul_dtype)

    out = pl.pallas_call(
        kernel,
        out_shape=jax.ShapeDtypeStruct((bp, 1), jnp.float32),
        grid=grid,
        in_specs=[
            pl.BlockSpec((tb, F), lambda i: (i, 0)),   # img tile   (pipelined)
            pl.BlockSpec((tb, H), lambda i: (i, 0)),   # dropout mask tile
            pl.BlockSpec((F, H), lambda i: (0, 0)),    # w1 (resident)
            pl.BlockSpec((1, H), lambda i: (0, 0)),    # b1 (resident)
            pl.BlockSpec((1, H), lambda i: (0, 0)),    # w2 row (resident)
            pl.BlockSpec(memory_space=pltpu.SMEM),     # b2 scalar
        ],
        out_specs=pl.BlockSpec((tb, 1), lambda i: (i, 0)),
        compiler_params=pltpu.CompilerParams(
            dimension_semantics=("parallel",),
            vmem_limit_bytes=vmem_limit,
        ),
    )(img, mask, w1, b1, w2_row, b2_s)

    return out[:B]


def init_params(key, in_features, hidden=128):
    """Deterministic init matching nn.Linear's U(-1/sqrt(fan_in), 1/sqrt(fan_in))."""
    k1, k2, k3, k4 = jax.random.split(key, 4)
    lim1 = 1.0 / jnp.sqrt(jnp.float32(in_features))
    lim2 = 1.0 / jnp.sqrt(jnp.float32(hidden))
    # stored transposed relative to torch: (in, out)
    w1 = jax.random.uniform(k1, (in_features, hidden), jnp.float32, -lim1, lim1)
    b1 = jax.random.uniform(k2, (1, hidden), jnp.float32, -lim1, lim1)
    w2 = jax.random.uniform(k3, (hidden, 1), jnp.float32, -lim2, lim2)
    b2 = jax.random.uniform(k4, (1, 1), jnp.float32, -lim2, lim2)
    return w1, b1, w2, b2


if __name__ == "__main__":
    img_size = (16, 16)      # -> in_features = 256
    drop_prob = 0.3
    batch = 8

    key = jax.random.PRNGKey(0)
    k_img, k_params, k_drop = jax.random.split(key, 3)

    in_features = img_size[0] * img_size[1]
    img = jax.random.normal(k_img, (batch, in_features), jnp.float32)
    w1, b1, w2, b2 = init_params(k_params, in_features)

    out = discriminator_forward(img, w1, b1, w2, b2,
                                drop_prob=drop_prob, key=k_drop)
    out = jax.block_until_ready(out)

    assert out.shape == (batch, 1)
    assert bool(jnp.all(jnp.isfinite(out)))
    assert bool(jnp.all((out >= 0.0) & (out <= 1.0)))
    print("KERNEL_OK")
</pallas_src>

<mosaic_0001>
module attributes {stable_mosaic.version = 11 : i64} {
  func.func @_disc_kernel(%arg0: i32, %arg1: memref<8x256xf32, #tpu.memory_space<vmem>>, %arg2: memref<8x128xf32, #tpu.memory_space<vmem>>, %arg3: memref<256x128xf32, #tpu.memory_space<vmem>>, %arg4: memref<1x128xf32, #tpu.memory_space<vmem>>, %arg5: memref<1x128xf32, #tpu.memory_space<vmem>>, %arg6: memref<1xf32, #tpu.memory_space<smem>>, %arg7: memref<8x1xf32, #tpu.memory_space<vmem>>) attributes {dimension_semantics = [#tpu.dimension_semantics<parallel>], iteration_bounds = array<i64: 1>, scalar_prefetch = 0 : i64, scratch_operands = 0 : i64, tpu.core_type = #tpu.core_type<tc>, window_params = [{transform_indices = @transform_0, window_bounds = array<i64: 8, 256>}, {transform_indices = @transform_1, window_bounds = array<i64: 8, 128>}, {pipeline_mode = #tpu.pipeline_mode<synchronous>, transform_indices = @transform_2, window_bounds = array<i64: 256, 128>}, {pipeline_mode = #tpu.pipeline_mode<synchronous>, transform_indices = @transform_3, window_bounds = array<i64: 1, 128>}, {pipeline_mode = #tpu.pipeline_mode<synchronous>, transform_indices = @transform_4, window_bounds = array<i64: 1, 128>}, {transform_indices = @transform_5, window_bounds = array<i64: 1>}, {transform_indices = @transform_6, window_bounds = array<i64: 8, 1>}]} {
    %c0 = arith.constant 0 : index
    %c0_0 = arith.constant 0 : index
    %0 = vector.load %arg1[%c0, %c0_0] : memref<8x256xf32, #tpu.memory_space<vmem>>, vector<8x256xf32>
    %1 = arith.truncf %0 : vector<8x256xf32> to vector<8x256xbf16>
    %c0_1 = arith.constant 0 : index
    %c0_2 = arith.constant 0 : index
    %2 = vector.load %arg3[%c0_1, %c0_2] : memref<256x128xf32, #tpu.memory_space<vmem>>, vector<256x128xf32>
    %3 = arith.truncf %2 : vector<256x128xf32> to vector<256x128xbf16>
    %cst = arith.constant dense<0.000000e+00> : vector<8x128xf32>
    %4 = tpu.matmul %1, %3, %cst {dimension_numbers = #tpu.dot_dimension_numbers<[1], [0], [0], [1], [0, 0, 1, 1], [], []>} : vector<8x256xbf16>, vector<256x128xbf16>, vector<8x128xf32> -> vector<8x128xf32>
    %c0_3 = arith.constant 0 : index
    %c0_4 = arith.constant 0 : index
    %5 = vector.load %arg4[%c0_3, %c0_4] : memref<1x128xf32, #tpu.memory_space<vmem>>, vector<1x128xf32>
    %6 = vector.broadcast %5 : vector<1x128xf32> to vector<8x128xf32>
    %7 = arith.addf %4, %6 : vector<8x128xf32>
    %cst_5 = arith.constant 0.000000e+00 : f32
    %8 = vector.broadcast %cst_5 : f32 to vector<8x128xf32>
    %9 = arith.cmpf oge, %7, %8 : vector<8x128xf32>
    %cst_6 = arith.constant 0.00999999977 : f32
    %10 = vector.broadcast %cst_6 : f32 to vector<8x128xf32>
    %11 = arith.mulf %10, %7 : vector<8x128xf32>
    %12 = arith.select %9, %7, %11 : vector<8x128xi1>, vector<8x128xf32>
    %c0_7 = arith.constant 0 : index
    %c0_8 = arith.constant 0 : index
    %13 = vector.load %arg2[%c0_7, %c0_8] : memref<8x128xf32, #tpu.memory_space<vmem>>, vector<8x128xf32>
    %14 = arith.mulf %12, %13 : vector<8x128xf32>
    %c0_9 = arith.constant 0 : index
    %c0_10 = arith.constant 0 : index
    %15 = vector.load %arg5[%c0_9, %c0_10] : memref<1x128xf32, #tpu.memory_space<vmem>>, vector<1x128xf32>
    %16 = vector.broadcast %15 : vector<1x128xf32> to vector<8x128xf32>
    %17 = arith.mulf %14, %16 : vector<8x128xf32>
    %cst_11 = arith.constant dense<0.000000e+00> : vector<8xf32>
    %18 = vector.multi_reduction <add>, %17, %cst_11 [1] : vector<8x128xf32> to vector<8xf32>
    %19 = vector.shape_cast %18 : vector<8xf32> to vector<8x1xf32>
    %c0_12 = arith.constant 0 : index
    %20 = memref.load %arg6[%c0_12] : memref<1xf32, #tpu.memory_space<smem>>
    %21 = vector.broadcast %20 : f32 to vector<8x1xf32>
    %22 = arith.addf %19, %21 : vector<8x1xf32>
    %cst_13 = arith.constant 0.000000e+00 : f32
    %23 = vector.broadcast %cst_13 : f32 to vector<8x1xf32>
    %24 = arith.subf %23, %22 : vector<8x1xf32>
    %25 = math.exp %24 : vector<8x1xf32>
    %cst_14 = arith.constant 1.000000e+00 : f32
    %26 = vector.broadcast %cst_14 : f32 to vector<8x1xf32>
    %27 = arith.addf %26, %25 : vector<8x1xf32>
    %cst_15 = arith.constant 1.000000e+00 : f32
    %28 = vector.broadcast %cst_15 : f32 to vector<8x1xf32>
    %29 = arith.divf %28, %27 : vector<8x1xf32>
    %c0_16 = arith.constant 0 : index
    %c0_17 = arith.constant 0 : index
    %30 = vector.load %arg7[%c0_16, %c0_17] : memref<8x1xf32, #tpu.memory_space<vmem>>, vector<8x1xf32>
    tpu.vector_store %arg7[%c0_16, %c0_17], %29 {strides = array<i32>} : memref<8x1xf32, #tpu.memory_space<vmem>>, vector<8x1xf32>,
    return
  }
  func.func @transform_0(%arg0: i32) -> (i32, i32) {
    %c0_i32 = arith.constant 0 : i32
    %c0_i32_0 = arith.constant 0 : i32
    return %arg0, %c0_i32 : i32, i32
  }
  func.func @transform_1(%arg0: i32) -> (i32, i32) {
    %c0_i32 = arith.constant 0 : i32
    %c0_i32_0 = arith.constant 0 : i32
    return %arg0, %c0_i32 : i32, i32
  }
  func.func @transform_2(%arg0: i32) -> (i32, i32) {
    %c0_i32 = arith.constant 0 : i32
    %c0_i32_0 = arith.constant 0 : i32
    %c0_i32_1 = arith.constant 0 : i32
    return %c0_i32, %c0_i32_0 : i32, i32
  }
  func.func @transform_3(%arg0: i32) -> (i32, i32) {
    %c0_i32 = arith.constant 0 : i32
    %c0_i32_0 = arith.constant 0 : i32
    %c0_i32_1 = arith.constant 0 : i32
    return %c0_i32, %c0_i32_0 : i32, i32
  }
  func.func @transform_4(%arg0: i32) -> (i32, i32) {
    %c0_i32 = arith.constant 0 : i32
    %c0_i32_0 = arith.constant 0 : i32
    %c0_i32_1 = arith.constant 0 : i32
    return %c0_i32, %c0_i32_0 : i32, i32
  }
  func.func @transform_5(%arg0: i32) -> i32 {
    %c0_i32 = arith.constant 0 : i32
    %c0_i32_0 = arith.constant 0 : i32
    return %c0_i32 : i32
  }
  func.func @transform_6(%arg0: i32) -> (i32, i32) {
    %c0_i32 = arith.constant 0 : i32
    %c0_i32_0 = arith.constant 0 : i32
    return %arg0, %c0_i32 : i32, i32
  }
}

</mosaic_0001>

<llo_original>
// kernel: tpu_custom_call.1
$region0: #{tpu_custom_call.1}
  #allocation0 [shape = 'u32[]', space=smem, size = 0x4, offset = 0x4, fixed_abs, tag = 'smem constant byte address 0x4 - core index']
  #allocation1 [shape = 'u32[72,128]{1,0:T(1,128)}', space=vmem, size = 0x9000, scoped, tag = 'internal scratch']
  #allocation2 [shape = 'f32[1]{0:T(128)S(6)}', space=smem, size = 0x200, scoped, tag = 'scoped memory for tpu_custom_call.1']
  %s0 = inlined_call_operand.hbm [shape: f32[8,256], index: 0, kind: input, shape index: {}]
  %s1 = inlined_call_operand.hbm [shape: f32[8,128], index: 1, kind: input, shape index: {}]
  %s2 = inlined_call_operand.hbm [shape: f32[256,128], index: 2, kind: input, shape index: {}]
  %s3 = inlined_call_operand.vmem [shape: f32[1,128], index: 3, kind: input, shape index: {}]
  %s4 = inlined_call_operand.vmem [shape: f32[1,128], index: 4, kind: input, shape index: {}]
  %s5 = inlined_call_operand.<no memory space> [shape: f32[1], index: 5, kind: input, shape index: {}]
  %s6 = inlined_call_operand.vmem [shape: f32[8,1], index: 6, kind: output, shape index: {}]
  %s7 = sld [smem:[#allocation0]]
  $region46: #{tpu_custom_call.1} parent=0
    _
  %s9 = ssub.s32 1, %s7
  %s10 = scalar_select 0, %s9, %s7
  %11 = sst [smem:[#allocation2]] %s5
  $region1: #{tpu_custom_call.1} parent=0
    #allocation3 [shape = 'u8[8192]{0}', space=vmem, size = 0x2000, scoped, tag = 'input window, operand 0, single buffered']
    #allocation4 [shape = 's32[1]{0}', space=sflag, size = 0x4, scoped, tag = 'scoped memory for tpu_custom_call.1']
    #allocation5 [shape = 'u8[4096]{0}', space=vmem, size = 0x1000, scoped, tag = 'input window, operand 1, single buffered']
    #allocation6 [shape = 's32[1]{0}', space=sflag, size = 0x4, scoped, tag = 'scoped memory for tpu_custom_call.1']
    #allocation7 [shape = 'u8[131072]{0}', space=vmem, size = 0x20000, scoped, tag = 'input window, operand 2, single buffered']
    %12 = vsyncpa [#allocation4], 0
    %13 = vsyncpa [#allocation6], 0
    // Predicated region
    $region2: #{tpu_custom_call.1} parent=1 // pred_check
      _
    $region3: #{tpu_custom_call.1} parent=1 // pred_check_branch
      %15 = sbr.rel (0) target = $region5
    $region4: #{tpu_custom_call.1} parent=1 // pred_region
      %17 = vsyncadd [#allocation4], 0
      %s19 = sshll.u32 %s0, 4
      %s20 = int_to_ptr.hbm [resolvable:$true] %s19
      %s21 = sshll.u32 [#allocation3], 4
      %s22 = int_to_ptr.vmem [resolvable:$true] %s21
      %24 = dma.hbm_to_vmem [thread:$0]  %s20, 256, %s22, [#allocation4]
    $region5: #{tpu_custom_call.1} parent=1 // pred_fallthru
      _
    // Predicated region
    $region6: #{tpu_custom_call.1} parent=1 // pred_check
      _
    $region7: #{tpu_custom_call.1} parent=1 // pred_check_branch
      %26 = sbr.rel (0) target = $region9
    $region8: #{tpu_custom_call.1} parent=1 // pred_region
      %28 = vsyncadd [#allocation6], 0
      %s30 = sshll.u32 %s1, 4
      %s31 = int_to_ptr.hbm [resolvable:$true] %s30
      %s32 = sshll.u32 [#allocation5], 4
      %s33 = int_to_ptr.vmem [resolvable:$true] %s32
      %35 = dma.hbm_to_vmem [thread:$0]  %s31, 128, %s33, [#allocation6]
    $region9: #{tpu_custom_call.1} parent=1 // pred_fallthru
      _
    // Predicated region
    $region10: #{tpu_custom_call.1} parent=1 // pred_check
      _
    $region11: #{tpu_custom_call.1} parent=1 // pred_check_branch
      %37 = sbr.rel (0) target = $region13
    $region12: #{tpu_custom_call.1} parent=1 // pred_region
      %39 = vsyncadd [#allocation6], 0
      %s40 = sshll.u32 %s2, 4
      %s41 = int_to_ptr.hbm [resolvable:$true] %s40
      %s42 = sshll.u32 [#allocation7], 4
      %s43 = int_to_ptr.vmem [resolvable:$true] %s42
      %48 = dma.hbm_to_vmem [thread:$0]  %s41, 4096, %s43, [#allocation6], 128, 128, 8
    $region13: #{tpu_custom_call.1} parent=1 // pred_fallthru
      _
    // Predicated region
    $region14: #{tpu_custom_call.1} parent=1 // pred_check
      _
    $region15: #{tpu_custom_call.1} parent=1 // pred_check_branch
      %50 = sbr.rel (0) target = $region17
    $region16: #{tpu_custom_call.1} parent=1 // pred_region
      _
    $region17: #{tpu_custom_call.1} parent=1 // pred_fallthru
      _
    // Predicated region
    $region18: #{tpu_custom_call.1} parent=1 // pred_check
      _
    $region19: #{tpu_custom_call.1} parent=1 // pred_check_branch
      %52 = sbr.rel (0) target = $region21
    $region20: #{tpu_custom_call.1} parent=1 // pred_region
      _
    $region21: #{tpu_custom_call.1} parent=1 // pred_fallthru
      _
    // Predicated region
    $region22: #{tpu_custom_call.1} parent=1 // pred_check
      _
    $region23: #{tpu_custom_call.1} parent=1 // pred_check_branch
      %54 = sbr.rel (0) target = $region25
    $region24: #{tpu_custom_call.1} parent=1 // pred_region
      _
    $region25: #{tpu_custom_call.1} parent=1 // pred_fallthru
      _
    // Predicated region
    $region26: #{tpu_custom_call.1} parent=1 // pred_check
      _
    $region27: #{tpu_custom_call.1} parent=1 // pred_check_branch
      %56 = sbr.rel (0) target = $region29
    $region28: #{tpu_custom_call.1} parent=1 // pred_region
      %58 = dma.done [#allocation4], 256
    $region29: #{tpu_custom_call.1} parent=1 // pred_fallthru
      _
    // Predicated region
    $region30: #{tpu_custom_call.1} parent=1 // pred_check
      _
    $region31: #{tpu_custom_call.1} parent=1 // pred_check_branch
      %60 = sbr.rel (0) target = $region33
    $region32: #{tpu_custom_call.1} parent=1 // pred_region
      %62 = dma.done [#allocation6], 128
    $region33: #{tpu_custom_call.1} parent=1 // pred_fallthru
      _
    // Predicated region
    $region34: #{tpu_custom_call.1} parent=1 // pred_check
      _
    $region35: #{tpu_custom_call.1} parent=1 // pred_check_branch
      %64 = sbr.rel (0) target = $region37
    $region36: #{tpu_custom_call.1} parent=1 // pred_region
      %66 = dma.done [#allocation6], 4096
    $region37: #{tpu_custom_call.1} parent=1 // pred_fallthru
      _
    %v67 = vld [vmem:[#allocation3] sm:$0xff]
    %v68 = vld [vmem:[#allocation3 + $0x8] sm:$0xff]
    %v69 = vpack.c.bf16 %v67, %v67
    %v70 = vpack.c.bf16 %v68, %v68
    %v71 = vld [vmem:[#allocation7] sm:$0xff]
    %v72 = vld [vmem:[#allocation7 + $0x8] sm:$0xff]
    %v73 = vld [vmem:[#allocation7 + $0x10] sm:$0xff]
    %v74 = vld [vmem:[#allocation7 + $0x18] sm:$0xff]
    %v75 = vld [vmem:[#allocation7 + $0x20] sm:$0xff]
    %v76 = vld [vmem:[#allocation7 + $0x28] sm:$0xff]
    %v77 = vld [vmem:[#allocation7 + $0x30] sm:$0xff]
    %v78 = vld [vmem:[#allocation7 + $0x38] sm:$0xff]
    %v79 = vld [vmem:[#allocation7 + $0x40] sm:$0xff]
    %v80 = vld [vmem:[#allocation7 + $0x48] sm:$0xff]
    %v81 = vld [vmem:[#allocation7 + $0x50] sm:$0xff]
    %v82 = vld [vmem:[#allocation7 + $0x58] sm:$0xff]
    %v83 = vld [vmem:[#allocation7 + $0x60] sm:$0xff]
    %v84 = vld [vmem:[#allocation7 + $0x68] sm:$0xff]
    %v85 = vld [vmem:[#allocation7 + $0x70] sm:$0xff]
    %v86 = vld [vmem:[#allocation7 + $0x78] sm:$0xff]
    %v87 = vld [vmem:[#allocation7 + $0x80] sm:$0xff]
    %v88 = vld [vmem:[#allocation7 + $0x88] sm:$0xff]
    %v89 = vld [vmem:[#allocation7 + $0x90] sm:$0xff]
    %v90 = vld [vmem:[#allocation7 + $0x98] sm:$0xff]
    %v91 = vld [vmem:[#allocation7 + $0xa0] sm:$0xff]
    %v92 = vld [vmem:[#allocation7 + $0xa8] sm:$0xff]
    %v93 = vld [vmem:[#allocation7 + $0xb0] sm:$0xff]
    %v94 = vld [vmem:[#allocation7 + $0xb8] sm:$0xff]
    %v95 = vld [vmem:[#allocation7 + $0xc0] sm:$0xff]
    %v96 = vld [vmem:[#allocation7 + $0xc8] sm:$0xff]
    %v97 = vld [vmem:[#allocation7 + $0xd0] sm:$0xff]
    %v98 = vld [vmem:[#allocation7 + $0xd8] sm:$0xff]
    %v99 = vld [vmem:[#allocation7 + $0xe0] sm:$0xff]
    %v100 = vld [vmem:[#allocation7 + $0xe8] sm:$0xff]
    %v101 = vld [vmem:[#allocation7 + $0xf0] sm:$0xff]
    %v102 = vld [vmem:[#allocation7 + $0xf8] sm:$0xff]
    %v103 = vpack.c.bf16 %v72, %v71
    %v104 = vpack.c.bf16 %v74, %v73
    %v105 = vpack.c.bf16 %v76, %v75
    %v106 = vpack.c.bf16 %v78, %v77
    %v107 = vpack.c.bf16 %v80, %v79
    %v108 = vpack.c.bf16 %v82, %v81
    %v109 = vpack.c.bf16 %v84, %v83
    %v110 = vpack.c.bf16 %v86, %v85
    %v111 = vpack.c.bf16 %v88, %v87
    %v112 = vpack.c.bf16 %v90, %v89
    %v113 = vpack.c.bf16 %v92, %v91
    %v114 = vpack.c.bf16 %v94, %v93
    %v115 = vpack.c.bf16 %v96, %v95
    %v116 = vpack.c.bf16 %v98, %v97
    %v117 = vpack.c.bf16 %v100, %v99
    %v118 = vpack.c.bf16 %v102, %v101
    %v119 = vld [vmem:[%s3] sm:$0x1]
    %v121 = vperm.slane %v119, 0
    %123 = vmatpush.bf16.msra.mxu0 %v110
    %124 = vmatpush.bf16.msra.mxu0 %v109
    %125 = vmatpush.bf16.msra.mxu0 %v108
    %126 = vmatpush.bf16.msra.mxu0 %v107
    %127 = vmatpush.bf16.msra.mxu0 %v106
    %128 = vmatpush.bf16.msra.mxu0 %v105
    %129 = vmatpush.bf16.msra.mxu0 %v104
    %130 = vmatpush.bf16.msra.mxu0 %v103
    %131 = vmatmul.bf16.gmra.mxu0 %v69
    %v132 = vpop.f32.mrf.mxu0
    %v133 = vadd.f32 %v121, %v132
    %v134 = vpop.f32.mrf.mxu0
    %135 = vdwg.mxu0
    %136 = vmatpush.bf16.msra.mxu0 %v118
    %137 = vmatpush.bf16.msra.mxu0 %v117
    %138 = vmatpush.bf16.msra.mxu0 %v116
    %139 = vmatpush.bf16.msra.mxu0 %v115
    %140 = vmatpush.bf16.msra.mxu0 %v114
    %141 = vmatpush.bf16.msra.mxu0 %v113
    %142 = vmatpush.bf16.msra.mxu0 %v112
    %143 = vmatpush.bf16.msra.mxu0 %v111
    %144 = vmatmul.bf16.gmra.mxu0 %v70
    %v145 = vpop.f32.mrf.mxu0
    %v146 = vadd.f32 %v133, %v145
    %v147 = vpop.f32.mrf.mxu0
    %148 = vdwg.mxu0
    %vm149 = vcmp.ge.f32.partialorder %v146, 0.0
    %v150 = vmul.f32 %v146, 0.01
    %v151 = vsel %vm149, %v146, %v150
    %v152 = vld [vmem:[#allocation5] sm:$0xff]
    %v153 = vmul.f32 %v151, %v152
    %v154 = vld [vmem:[%s4] sm:$0x1]
    %v156 = vperm.slane %v154, 0
    %v158 = vmul.f32 %v153, %v156
    %159 = vadd.xlane.f32.xlu0 %v158
    %v160 = vpop.xlane.xlu0 %159
    %s161 = sld [smem:[#allocation2]]
    %v162 = vstv %s161
    %v163 = vadd.f32 %v160, %v162
    %v164 = vsub.f32 0.0, %v163
    %v165 = vmul.f32 %v164, 1.442695
    %v166 = vpow.pop %v165
    %v167 = vadd.f32 %v166, 1.0
    %v168 = vrcp.pop %v167
    %v169 = vmul.f32 %v167, %v168
    %v170 = vsub.f32 1.0, %v169
    %v171 = vmul.f32 %v168, %v170
    %v172 = vadd.f32 %v168, %v171
    %vm173 = vweird.f32 %v167
    %vm174 = vweird.f32 %v168
    %vm175 = vmor %vm173, %vm174
    %v176 = vsel %vm175, %v168, %v172
    %v177 = vand.u32 2147483647, %v167
    %vm178 = vcmp.eq.f32.partialorder %v177, 8.507059e+37
    %v179 = vand.u32 %v167, 2147483648
    %v180 = vor.u32 1.1754944e-38, %v179
    %v181 = vsel %vm178, %v180, %v176
    %v182 = vmul.f32 1.0, %v181
    %vm183 = vcmask 7168
    %184 = vst.msk [vmem:[%s6] sm:$0xff] %vm183, %v182
    // Predicated region
    $region38: #{tpu_custom_call.1} parent=1 // pred_check
      _
    $region39: #{tpu_custom_call.1} parent=1 // pred_check_branch
      %186 = sbr.rel (0) target = $region41
    $region40: #{tpu_custom_call.1} parent=1 // pred_region
      _
    $region41: #{tpu_custom_call.1} parent=1 // pred_fallthru
      _
    // Predicated region
    $region42: #{tpu_custom_call.1} parent=1 // pred_check
      _
    $region43: #{tpu_custom_call.1} parent=1 // pred_check_branch
      %188 = sbr.rel (0) target = $region45
    $region44: #{tpu_custom_call.1} parent=1 // pred_region
      _
    $region45: #{tpu_custom_call.1} parent=1 // pred_fallthru
      _
    %189 = vsyncpa [#allocation4], 1
    %190 = vsyncpa [#allocation6], 1

</llo_original>
